<compile_context>
chip_gen: v5e
topology: v5e:2x2
jax: 0.10.0
libtpu: 0.0.40
codegen_flags: <defaults>
</compile_context>

<pallas_src>
import jax
import jax.numpy as jnp
from jax.experimental import pallas as pl
from jax.experimental.pallas import tpu as pltpu


LANE = 128


def _round_up(n, m):
    return ((n + m - 1) // m) * m


def _pick_batch_tile(B):
    """Images per grid step.  Aim for up to 8 (step-overhead amortization, FC
    MXU M) while keeping >= 2 grid steps when B >= 2 so v7x's 2 TCs split the
    grid (dimension_semantics=("parallel",)); harmless on 1-TC v5e/v6e."""
    if B <= 1:
        return 1
    return max(1, min(8, B // 2))


# ---------------------------------------------------------------------------
# Fused classifier kernel: conv3x3 (+bias, via im2col matmul) + ReLU + GAP + FC
# One grid step == Bt images; lane-dense everywhere (HIDP = NCP = 128).
# ---------------------------------------------------------------------------
def _model_kernel(colx_ref, cw_ref, fw_ref, fb_ref, out_ref):
    # colx_ref: (Bt, H*W, 9*Cin+1) bf16 im2col patches (+ ones column for bias)
    # cw_ref  : (9*Cin+1, HIDP)    bf16 conv weight, tap-major, bias as last row
    # fw_ref  : (HIDP, NCP)        bf16 fc weight with 1/(H*W) GAP scale folded
    # fb_ref  : (1, NCP)           f32 fc bias (zero-padded)
    # out_ref : (1, Bt, NCP)       f32 lane-dense logits for this image tile
    bt, hw, kc1 = colx_ref.shape
    hidp = cw_ref.shape[1]

    # conv3x3 + bias as ONE MXU matmul (bf16 operands, f32 accumulate).
    # hw is a multiple of 8 (and of the bf16 sublane pack), so the reshape is a
    # layout no-op.
    cols = colx_ref[...].reshape(bt * hw, kc1)
    conv = jnp.dot(cols, cw_ref[...], preferred_element_type=jnp.float32)
    act = jnp.maximum(conv, 0.0)                                  # ReLU (f32, VPU)

    # Global average pool: 1/(H*W) folded into fw -> plain per-image sum.
    pooled = jnp.sum(act.reshape(bt, hw, hidp), axis=1)           # (Bt, HIDP) f32

    logits = jnp.dot(pooled.astype(fw_ref.dtype), fw_ref[...],
                     preferred_element_type=jnp.float32) + fb_ref[...]
    out_ref[...] = logits[None].astype(out_ref.dtype)             # (1, Bt, NCP)


def _im2col_3x3(x_nhwc):
    """Host-side layout plumbing (done ONCE): pad=1, 3x3 patches (tap-major),
    plus a trailing ones column so the conv bias folds into the matmul."""
    B, H, W, Cin = x_nhwc.shape
    xp = jnp.pad(x_nhwc, ((0, 0), (1, 1), (1, 1), (0, 0)))
    taps = [xp[:, dy:dy + H, dx:dx + W, :]
            for dy in range(3) for dx in range(3)]                # tap = dy*3+dx
    cols = jnp.concatenate(taps, axis=-1).reshape(B, H * W, 9 * Cin)
    ones = jnp.ones((B, H * W, 1), cols.dtype)
    return jnp.concatenate([cols, ones], axis=-1)                 # K = 9*Cin + 1


def _prep_params(params, hw):
    """Reshape/pad weights once: tap-major conv weight with bias folded as the
    last row, lane-dense HID/NC, GAP scale folded into the FC weight, bf16
    MXU operands (fc bias stays f32 for the final add)."""
    cw, cb, fw, fb = params
    kh, kw, cin, hid = cw.shape
    nc = fw.shape[-1]
    hidp = _round_up(max(hid, LANE), LANE)
    ncp = _round_up(max(nc, LANE), LANE)
    kc1 = kh * kw * cin + 1

    cw_p = jnp.zeros((kc1, hidp), jnp.float32)
    cw_p = cw_p.at[:kc1 - 1, :hid].set(cw.reshape(kh * kw * cin, hid))
    cw_p = cw_p.at[kc1 - 1, :hid].set(cb)                         # folded bias row
    fw_p = jnp.zeros((hidp, ncp), jnp.float32).at[:hid, :nc].set(fw / float(hw))
    fb_p = jnp.zeros((1, ncp), jnp.float32).at[0, :nc].set(fb)
    return cw_p.astype(jnp.bfloat16), fw_p.astype(jnp.bfloat16), fb_p


def _const_weight_spec(shape):
    """Constant-index (resident) weight block: single-buffer it if the running
    JAX supports pipeline_mode — double-buffering a block whose index never
    changes only wastes VMEM (notably on v7x's 64 MiB)."""
    idx = lambda b: (0,) * len(shape)
    if hasattr(pl, "Buffered"):
        try:
            return pl.BlockSpec(shape, idx, pipeline_mode=pl.Buffered(1))
        except TypeError:
            pass
    return pl.BlockSpec(shape, idx)


def _model_forward(cols, prepped, nc):
    """Run one synthetic classifier entirely inside one Pallas kernel."""
    cw_p, fw_p, fb_p = prepped
    B, HW, KC1 = cols.shape
    NCP = fw_p.shape[1]

    bt = _pick_batch_tile(B)
    g = pl.cdiv(B, bt)
    b_pad = g * bt
    if b_pad != B:                                   # pad batch to a tile multiple
        cols = jnp.pad(cols, ((0, b_pad - B), (0, 0), (0, 0)))

    out = pl.pallas_call(
        _model_kernel,
        grid=(g,),
        in_specs=[
            # cols is the only per-step streamed operand (default 2-deep
            # pipeline; raise to pl.Buffered(3) if DMA gets exposed at larger
            # batch tiles / real shapes).
            pl.BlockSpec((bt, HW, KC1), lambda b: (b, 0, 0)),
            _const_weight_spec(cw_p.shape),
            _const_weight_spec(fw_p.shape),
            _const_weight_spec(fb_p.shape),
        ],
        out_specs=pl.BlockSpec((1, bt, NCP), lambda b: (b, 0, 0)),
        out_shape=jax.ShapeDtypeStruct((g, bt, NCP), jnp.float32),
        compiler_params=pltpu.CompilerParams(
            dimension_semantics=("parallel",)),      # v7x: 2 TCs split the grid
    )(cols, cw_p, fw_p, fb_p)
    return out.reshape(b_pad, NCP)[:B, :nc]          # drop batch/lane padding


# ---------------------------------------------------------------------------
# combine_predictions: mean over dim 0.  The reference stack has length 1, so
# this is an identity — pure JAX (fused away under jit), no Pallas launch.
# ---------------------------------------------------------------------------
def combine_predictions(outputs):
    return jnp.mean(outputs, axis=0)


# ---------------------------------------------------------------------------
# DENN forward (reproduces the reference indentation bug exactly)
# ---------------------------------------------------------------------------
def denn_forward(x_nchw, models_params):
    # NCHW -> NHWC once (channels on the lane axis), im2col once, bf16 once.
    x = jnp.transpose(x_nchw, (0, 2, 3, 1))
    B, H, W, C = x.shape
    cols = _im2col_3x3(x).astype(jnp.bfloat16)

    # Reference bug: every sub-model output is overwritten; only the LAST one
    # is appended.  The 3 discarded forward passes are dead code -> skip them.
    last_params = models_params[-1]
    nc = last_params[2].shape[-1]
    output = _model_forward(cols, _prep_params(last_params, H * W), nc)

    outputs = jnp.stack([output])          # (1, B, NC)
    return combine_predictions(outputs)    # mean over a length-1 dim == output


# ---------------------------------------------------------------------------
# Deterministic synthetic parameter init for the 4 ensemble members
# ---------------------------------------------------------------------------
def make_model_params(key, cin, hid, nc):
    k1, k2, k3, k4 = jax.random.split(key, 4)
    cw = jax.random.normal(k1, (3, 3, cin, hid), jnp.float32) * 0.1
    cb = jax.random.normal(k2, (hid,), jnp.float32) * 0.01
    fw = jax.random.normal(k3, (hid, nc), jnp.float32) * 0.1
    fb = jax.random.normal(k4, (nc,), jnp.float32) * 0.01
    return (cw, cb, fw, fb)


if __name__ == "__main__":
    B, C, H, W = 2, 4, 16, 16
    HID, NUM_CLASSES = 32, 10
    N_MODELS = 4  # densenet, resnet, mobilenet, densenet201 stand-ins

    root = jax.random.PRNGKey(0)
    kx, *model_keys = jax.random.split(root, 1 + N_MODELS)

    x = jax.random.normal(kx, (B, C, H, W), jnp.float32)  # NCHW, like PyTorch
    models_params = [make_model_params(k, C, HID, NUM_CLASSES) for k in model_keys]

    denn = jax.jit(denn_forward)
    out = denn(x, models_params)
    out = jax.block_until_ready(out)

    assert out.shape == (B, NUM_CLASSES), out.shape

    # Pure-JAX f32 reference of the last model (== DENN output per reference).
    def ref_model(x_nchw, params):
        cw, cb, fw, fb = params
        xh = jnp.transpose(x_nchw, (0, 2, 3, 1))
        conv = jax.lax.conv_general_dilated(
            xh, cw, window_strides=(1, 1), padding="SAME",
            dimension_numbers=("NHWC", "HWIO", "NHWC"))
        act = jnp.maximum(conv + cb, 0.0)
        pooled = jnp.mean(act, axis=(1, 2))
        return pooled @ fw + fb

    ref = ref_model(x, models_params[-1])
    # bf16 MXU operands (f32 accumulate) -> tolerance loosened accordingly.
    assert jnp.allclose(out, ref, atol=5e-3, rtol=5e-3), (
        float(jnp.max(jnp.abs(out - ref))))

    print("KERNEL_OK")
</pallas_src>

<mosaic_0001>
module attributes {stable_mosaic.version = 11 : i64} {
  func.func @_model_kernel(%arg0: i32, %arg1: memref<1x256x37xbf16, #tpu.memory_space<vmem>>, %arg2: memref<37x128xbf16, #tpu.memory_space<vmem>>, %arg3: memref<128x128xbf16, #tpu.memory_space<vmem>>, %arg4: memref<1x128xf32, #tpu.memory_space<vmem>>, %arg5: memref<1x1x128xf32, #tpu.memory_space<vmem>>) attributes {dimension_semantics = [#tpu.dimension_semantics<parallel>], iteration_bounds = array<i64: 2>, scalar_prefetch = 0 : i64, scratch_operands = 0 : i64, tpu.core_type = #tpu.core_type<tc>, window_params = [{transform_indices = @transform_0, window_bounds = array<i64: 1, 256, 37>}, {pipeline_mode = #tpu.pipeline_mode<synchronous>, transform_indices = @transform_1, window_bounds = array<i64: 37, 128>}, {pipeline_mode = #tpu.pipeline_mode<synchronous>, transform_indices = @transform_2, window_bounds = array<i64: 128, 128>}, {pipeline_mode = #tpu.pipeline_mode<synchronous>, transform_indices = @transform_3, window_bounds = array<i64: 1, 128>}, {transform_indices = @transform_4, window_bounds = array<i64: 1, 1, 128>}]} {
    %c0 = arith.constant 0 : index
    %c0_0 = arith.constant 0 : index
    %c0_1 = arith.constant 0 : index
    %0 = vector.load %arg1[%c0, %c0_0, %c0_1] : memref<1x256x37xbf16, #tpu.memory_space<vmem>>, vector<1x256x37xbf16>
    %1 = vector.shape_cast %0 : vector<1x256x37xbf16> to vector<256x37xbf16>
    %c0_2 = arith.constant 0 : index
    %c0_3 = arith.constant 0 : index
    %2 = vector.load %arg2[%c0_2, %c0_3] : memref<37x128xbf16, #tpu.memory_space<vmem>>, vector<37x128xbf16>
    %cst = arith.constant dense<0.000000e+00> : vector<256x128xf32>
    %3 = tpu.matmul %1, %2, %cst {dimension_numbers = #tpu.dot_dimension_numbers<[1], [0], [0], [1], [0, 0, 1, 1], [], []>} : vector<256x37xbf16>, vector<37x128xbf16>, vector<256x128xf32> -> vector<256x128xf32>
    %cst_4 = arith.constant 0.000000e+00 : f32
    %4 = vector.broadcast %cst_4 : f32 to vector<256x128xf32>
    %5 = arith.maximumf %3, %4 : vector<256x128xf32>
    %6 = vector.shape_cast %5 : vector<256x128xf32> to vector<1x256x128xf32>
    %cst_5 = arith.constant dense<0.000000e+00> : vector<1x128xf32>
    %7 = vector.multi_reduction <add>, %6, %cst_5 [1] : vector<1x256x128xf32> to vector<1x128xf32>
    %8 = arith.truncf %7 : vector<1x128xf32> to vector<1x128xbf16>
    %c0_6 = arith.constant 0 : index
    %c0_7 = arith.constant 0 : index
    %9 = vector.load %arg3[%c0_6, %c0_7] : memref<128x128xbf16, #tpu.memory_space<vmem>>, vector<128x128xbf16>
    %cst_8 = arith.constant dense<0.000000e+00> : vector<1x128xf32>
    %10 = tpu.matmul %8, %9, %cst_8 {dimension_numbers = #tpu.dot_dimension_numbers<[1], [0], [0], [1], [0, 0, 1, 1], [], []>} : vector<1x128xbf16>, vector<128x128xbf16>, vector<1x128xf32> -> vector<1x128xf32>
    %c0_9 = arith.constant 0 : index
    %c0_10 = arith.constant 0 : index
    %11 = vector.load %arg4[%c0_9, %c0_10] : memref<1x128xf32, #tpu.memory_space<vmem>>, vector<1x128xf32>
    %12 = arith.addf %10, %11 : vector<1x128xf32>
    %13 = vector.shape_cast %12 : vector<1x128xf32> to vector<1x1x128xf32>
    %c0_11 = arith.constant 0 : index
    %c0_12 = arith.constant 0 : index
    %c0_13 = arith.constant 0 : index
    %14 = vector.load %arg5[%c0_11, %c0_12, %c0_13] : memref<1x1x128xf32, #tpu.memory_space<vmem>>, vector<1x1x128xf32>
    tpu.vector_store %arg5[%c0_11, %c0_12, %c0_13], %13 {strides = array<i32>} : memref<1x1x128xf32, #tpu.memory_space<vmem>>, vector<1x1x128xf32>,
    return
  }
  func.func @transform_0(%arg0: i32) -> (i32, i32, i32) {
    %c0_i32 = arith.constant 0 : i32
    %c0_i32_0 = arith.constant 0 : i32
    %c0_i32_1 = arith.constant 0 : i32
    return %arg0, %c0_i32, %c0_i32_0 : i32, i32, i32
  }
  func.func @transform_1(%arg0: i32) -> (i32, i32) {
    %c0_i32 = arith.constant 0 : i32
    %c0_i32_0 = arith.constant 0 : i32
    %c0_i32_1 = arith.constant 0 : i32
    return %c0_i32, %c0_i32_0 : i32, i32
  }
  func.func @transform_2(%arg0: i32) -> (i32, i32) {
    %c0_i32 = arith.constant 0 : i32
    %c0_i32_0 = arith.constant 0 : i32
    %c0_i32_1 = arith.constant 0 : i32
    return %c0_i32, %c0_i32_0 : i32, i32
  }
  func.func @transform_3(%arg0: i32) -> (i32, i32) {
    %c0_i32 = arith.constant 0 : i32
    %c0_i32_0 = arith.constant 0 : i32
    %c0_i32_1 = arith.constant 0 : i32
    return %c0_i32, %c0_i32_0 : i32, i32
  }
  func.func @transform_4(%arg0: i32) -> (i32, i32, i32) {
    %c0_i32 = arith.constant 0 : i32
    %c0_i32_0 = arith.constant 0 : i32
    %c0_i32_1 = arith.constant 0 : i32
    return %arg0, %c0_i32, %c0_i32_0 : i32, i32, i32
  }
}

</mosaic_0001>

<llo_original>
// kernel: denn_forward.1
$region0: #{denn_forward.1}
  #allocation0 [shape = 'u32[]', space=smem, size = 0x4, offset = 0x4, fixed_abs, tag = 'smem constant byte address 0x4 - core index']
  #allocation1 [shape = 'u32[72,128]{1,0:T(1,128)}', space=vmem, size = 0x9000, scoped, tag = 'internal scratch']
  %s0 = inlined_call_operand.vmem [shape: bf16[2,256,37], index: 0, kind: input, shape index: {}]
  %s1 = inlined_call_operand.vmem [shape: bf16[37,128], index: 1, kind: input, shape index: {}]
  %s2 = inlined_call_operand.vmem [shape: bf16[128,128], index: 2, kind: input, shape index: {}]
  %s3 = inlined_call_operand.vmem [shape: f32[1,128], index: 3, kind: input, shape index: {}]
  %s4 = inlined_call_operand.hbm [shape: f32[2,1,128], index: 4, kind: output, shape index: {}]
  %s5 = sld [smem:[#allocation0]]
  $region49: #{denn_forward.1} parent=0
    _
  %s7 = ssub.s32 1, %s5
  %s8 = scalar_select 0, %s7, %s5
  $region1: #{denn_forward.1} parent=0
    #allocation2 [shape = 'u8[1024]{0}', space=vmem, size = 0x400, scoped, tag = 'output window, operand 0']
    #allocation3 [shape = 's32[2]{0}', space=sflag, size = 0x8, scoped, tag = 'scoped memory for denn_forward.1']
    %9 = vsyncpa [#allocation3], 0
    %s10 = scalar_lea.sflag [#allocation3], 1
    %11 = vsyncpa %s10, 0
    loop: start=0, step=1, limit=4
    $region2: #{denn_forward.1} parent=1 // loop_pre_header
      _
    $region3: #{denn_forward.1} parent=1 // loop_header
      %s13 = sphi 0, %s17
      %p14 = scmp.ge.s32.totalorder %s13, 4
      %s23 = sphi 0, %s25
      %s26 = sphi 0, %s23
      %s27 = sphi 0, %s26
      %s43 = sphi 0, %s27
      %s47 = sphi 0, %s47
      %s49 = sphi 0, %s47
      %s50 = sphi 0, %s49
      %s64 = sphi 0, %s50
      %s68 = sphi 0, %s68
      %s70 = sphi 0, %s68
      %s71 = sphi 0, %s70
      %s85 = sphi 0, %s71
      %s89 = sphi 0, %s89
      %s91 = sphi 0, %s89
      %s92 = sphi 0, %s91
      %s106 = sphi 0, %s92
      %s112 = sphi 0, %s114
      %s115 = sphi 0, %s112
      %s116 = sphi 0, %s115
      %s132 = sphi 0, %s116
    $region4: #{denn_forward.1} parent=1 // loop_header_branch
      %16 = sbr.rel (%p14) target = $region8
    $region5: #{denn_forward.1} parent=1 // loop_body
      %s18 = ssub.s32 %s13, 1
      %s19 = ssub.s32 %s13, 2
      %s20 = sadd.s32 %s13, 1
      %s21 = ssub.s32 %s13, %s20
      %p22 = scmp.eq.s32.totalorder %s21, 0
      %s24 = sadd.s32 %s23, 1
      %s25 = scalar_select %p22, %s23, %s24
      %p28 = pneg %p22
      %p29 = scmp.eq.s32.totalorder %s13, 1
      %p30 = por %p28, %p29
      %p31 = scmp.ne.s32.totalorder %s23, %s26
      %p32 = scmp.eq.s32.totalorder %s13, 0
      %p33 = por %p31, %p32
      %p34 = scmp.ne.s32.totalorder %s23, %s26
      %p35 = scmp.eq.s32.totalorder %s18, 1
      %p36 = por %p34, %p35
      %p37 = scmp.ne.s32.totalorder %s26, %s27
      %p38 = scmp.eq.s32.totalorder %s18, 0
      %p39 = por %p37, %p38
      %p40 = scmp.ne.s32.totalorder %s26, %s27
      %p41 = scmp.eq.s32.totalorder %s19, 1
      %p42 = por %p40, %p41
      %p44 = scmp.ne.s32.totalorder %s27, %s43
      %p45 = scmp.eq.s32.totalorder %s19, 0
      %p46 = por %p44, %p45
      %s48 = sadd.s32 %s47, 1
      %p51 = scmp.eq.s32.totalorder %s13, 1
      %p52 = scmp.ne.s32.totalorder %s47, %s49
      %p53 = scmp.eq.s32.totalorder %s13, 0
      %p54 = por %p52, %p53
      %p55 = scmp.ne.s32.totalorder %s47, %s49
      %p56 = scmp.eq.s32.totalorder %s18, 1
      %p57 = por %p55, %p56
      %p58 = scmp.ne.s32.totalorder %s49, %s50
      %p59 = scmp.eq.s32.totalorder %s18, 0
      %p60 = por %p58, %p59
      %p61 = scmp.ne.s32.totalorder %s49, %s50
      %p62 = scmp.eq.s32.totalorder %s19, 1
      %p63 = por %p61, %p62
      %p65 = scmp.ne.s32.totalorder %s50, %s64
      %p66 = scmp.eq.s32.totalorder %s19, 0
      %p67 = por %p65, %p66
      %s69 = sadd.s32 %s68, 1
      %p72 = scmp.eq.s32.totalorder %s13, 1
      %p73 = scmp.ne.s32.totalorder %s68, %s70
      %p74 = scmp.eq.s32.totalorder %s13, 0
      %p75 = por %p73, %p74
      %p76 = scmp.ne.s32.totalorder %s68, %s70
      %p77 = scmp.eq.s32.totalorder %s18, 1
      %p78 = por %p76, %p77
      %p79 = scmp.ne.s32.totalorder %s70, %s71
      %p80 = scmp.eq.s32.totalorder %s18, 0
      %p81 = por %p79, %p80
      %p82 = scmp.ne.s32.totalorder %s70, %s71
      %p83 = scmp.eq.s32.totalorder %s19, 1
      %p84 = por %p82, %p83
      %p86 = scmp.ne.s32.totalorder %s71, %s85
      %p87 = scmp.eq.s32.totalorder %s19, 0
      %p88 = por %p86, %p87
      %s90 = sadd.s32 %s89, 1
      %p93 = scmp.eq.s32.totalorder %s13, 1
      %p94 = scmp.ne.s32.totalorder %s89, %s91
      %p95 = scmp.eq.s32.totalorder %s13, 0
      %p96 = por %p94, %p95
      %p97 = scmp.ne.s32.totalorder %s89, %s91
      %p98 = scmp.eq.s32.totalorder %s18, 1
      %p99 = por %p97, %p98
      %p100 = scmp.ne.s32.totalorder %s91, %s92
      %p101 = scmp.eq.s32.totalorder %s18, 0
      %p102 = por %p100, %p101
      %p103 = scmp.ne.s32.totalorder %s91, %s92
      %p104 = scmp.eq.s32.totalorder %s19, 1
      %p105 = por %p103, %p104
      %p107 = scmp.ne.s32.totalorder %s92, %s106
      %p108 = scmp.eq.s32.totalorder %s19, 0
      %p109 = por %p107, %p108
      %s110 = ssub.s32 %s13, %s20
      %p111 = scmp.eq.s32.totalorder %s110, 0
      %s113 = sadd.s32 %s112, 1
      %s114 = scalar_select %p111, %s112, %s113
      %p117 = pneg %p111
      %p118 = scmp.eq.s32.totalorder %s13, 1
      %p119 = por %p117, %p118
      %p120 = scmp.ne.s32.totalorder %s112, %s115
      %p121 = scmp.eq.s32.totalorder %s13, 0
      %p122 = por %p120, %p121
      %p123 = scmp.ne.s32.totalorder %s112, %s115
      %p124 = scmp.eq.s32.totalorder %s18, 1
      %p125 = por %p123, %p124
      %p126 = scmp.ne.s32.totalorder %s115, %s116
      %p127 = scmp.eq.s32.totalorder %s18, 0
      %p128 = por %p126, %p127
      %p129 = scmp.ne.s32.totalorder %s115, %s116
      %p130 = scmp.eq.s32.totalorder %s19, 1
      %p131 = por %p129, %p130
      %p133 = scmp.ne.s32.totalorder %s116, %s132
      %p134 = scmp.eq.s32.totalorder %s19, 0
      %p135 = por %p133, %p134
      %p136 = scmp.le.s32.totalorder 1, %s13
      %p137 = scmp.lt.s32.totalorder %s13, 3
      %p138 = pnand %p136, %p137
      %p139 = pneg %p138
      // Predicated region
      $region9: #{denn_forward.1} parent=5 // pred_check
        _
      $region10: #{denn_forward.1} parent=5 // pred_check_branch
        %141 = sbr.rel (%p138) target = $region12
      $region11: #{denn_forward.1} parent=5 // pred_region
        %s142 = ssub.s32 %s13, 1
        // Predicated region
        $region13: #{denn_forward.1} parent=11 // pred_check
          %p143 = pneg %p60
        $region14: #{denn_forward.1} parent=11 // pred_check_branch
          %145 = sbr.rel (%p143) target = $region16
        $region15: #{denn_forward.1} parent=11 // pred_region
          _
        $region16: #{denn_forward.1} parent=11 // pred_fallthru
          _
        // Predicated region
        $region17: #{denn_forward.1} parent=11 // pred_check
          %p146 = pneg %p81
        $region18: #{denn_forward.1} parent=11 // pred_check_branch
          %148 = sbr.rel (%p146) target = $region20
        $region19: #{denn_forward.1} parent=11 // pred_region
          _
        $region20: #{denn_forward.1} parent=11 // pred_fallthru
          _
        // Predicated region
        $region21: #{denn_forward.1} parent=11 // pred_check
          %p149 = pneg %p102
        $region22: #{denn_forward.1} parent=11 // pred_check_branch
          %151 = sbr.rel (%p149) target = $region24
        $region23: #{denn_forward.1} parent=11 // pred_region
          _
        $region24: #{denn_forward.1} parent=11 // pred_fallthru
          _
      $region12: #{denn_forward.1} parent=5 // pred_fallthru
        _
      %p152 = scmp.lt.s32.totalorder %s13, 2
      // Predicated region
      $region25: #{denn_forward.1} parent=5 // pred_check
        %p153 = pneg %p152
      $region26: #{denn_forward.1} parent=5 // pred_check_branch
        %155 = sbr.rel (%p153) target = $region28
      $region27: #{denn_forward.1} parent=5 // pred_region
        // Predicated region
        $region29: #{denn_forward.1} parent=27 // pred_check
          %p156 = pneg %p33
        $region30: #{denn_forward.1} parent=27 // pred_check_branch
          %158 = sbr.rel (%p156) target = $region32
        $region31: #{denn_forward.1} parent=27 // pred_region
          %p159 = scmp.lt.s32.totalorder %s13, 1
          %s160 = scalar_select %p159, %s13, 1
          %s161 = smul.addr %s160, 32
          %s162 = smul.addr %s161, 4
          %s163 = scalar_lea.vmem %s0, %s162
        $region32: #{denn_forward.1} parent=27 // pred_fallthru
          _
      $region28: #{denn_forward.1} parent=5 // pred_fallthru
        _
      %p164 = scmp.le.s32.totalorder 1, %s13
      %p165 = scmp.lt.s32.totalorder %s13, 3
      %p166 = pnand %p164, %p165
      %p167 = pneg %p166
      // Predicated region
      $region33: #{denn_forward.1} parent=5 // pred_check
        _
      $region34: #{denn_forward.1} parent=5 // pred_check_branch
        %169 = sbr.rel (%p166) target = $region36
      $region35: #{denn_forward.1} parent=5 // pred_region
        %s170 = ssub.s32 %s13, 1
        %p171 = scmp.lt.s32.totalorder %s18, 1
        %s172 = scalar_select %p171, %s18, 1
        %s173 = smul.addr %s172, 32
        %s174 = smul.addr %s173, 4
        %s175 = scalar_lea.vmem %s0, %s174
        %p176 = pneg %p39
        %p177 = pneg %p36
        %p178 = pneg %p60
        %p179 = pneg %p57
        %p180 = pneg %p81
        %p181 = pneg %p78
        %p182 = pneg %p102
        %p183 = pneg %p99
        %p184 = pneg %p128
        %p185 = pneg %p125
        %s186 = sand.u32 %s115, 1
        %s187 = scalar_lea.sflag [#allocation3], %s186
        %s188 = sand.u32 %s115, 1
        %s189 = scalar_lea.vmem [#allocation2], %s188
        %p190 = scmp.lt.s32.totalorder %s18, 1
        %s191 = scalar_select %p190, %s18, 1
        %s192 = smul.addr %s191, 32
        %s193 = smul.addr %s192, 4
        %s194 = scalar_lea.vmem %s0, %s193
        %v196 = vld [vmem:[%s194] sm:$0xf]
        %v197 = vld [vmem:[%s194 + $0x4] sm:$0xf]
        %v198 = vld [vmem:[%s194 + $0x8] sm:$0xf]
        %v199 = vld [vmem:[%s194 + $0xc] sm:$0xf]
        %v200 = vld [vmem:[%s194 + $0x10] sm:$0xf]
        %v201 = vld [vmem:[%s194 + $0x14] sm:$0xf]
        %v202 = vld [vmem:[%s194 + $0x18] sm:$0xf]
        %v203 = vld [vmem:[%s194 + $0x1c] sm:$0xf]
        %v204 = vld [vmem:[%s194 + $0x20] sm:$0xf]
        %v205 = vld [vmem:[%s194 + $0x24] sm:$0xf]
        %v206 = vld [vmem:[%s194 + $0x28] sm:$0xf]
        %v207 = vld [vmem:[%s194 + $0x2c] sm:$0xf]
        %v208 = vld [vmem:[%s194 + $0x30] sm:$0xf]
        %v209 = vld [vmem:[%s194 + $0x34] sm:$0xf]
        %v210 = vld [vmem:[%s194 + $0x38] sm:$0xf]
        %v211 = vld [vmem:[%s194 + $0x3c] sm:$0xf]
        %v212 = vld [vmem:[%s194 + $0x40] sm:$0xf]
        %v213 = vld [vmem:[%s194 + $0x44] sm:$0xf]
        %v214 = vld [vmem:[%s194 + $0x48] sm:$0xf]
        %v215 = vld [vmem:[%s194 + $0x4c] sm:$0xf]
        %v216 = vld [vmem:[%s194 + $0x50] sm:$0xf]
        %v217 = vld [vmem:[%s194 + $0x54] sm:$0xf]
        %v218 = vld [vmem:[%s194 + $0x58] sm:$0xf]
        %v219 = vld [vmem:[%s194 + $0x5c] sm:$0xf]
        %v220 = vld [vmem:[%s194 + $0x60] sm:$0xf]
        %v221 = vld [vmem:[%s194 + $0x64] sm:$0xf]
        %v222 = vld [vmem:[%s194 + $0x68] sm:$0xf]
        %v223 = vld [vmem:[%s194 + $0x6c] sm:$0xf]
        %v224 = vld [vmem:[%s194 + $0x70] sm:$0xf]
        %v225 = vld [vmem:[%s194 + $0x74] sm:$0xf]
        %v226 = vld [vmem:[%s194 + $0x78] sm:$0xf]
        %v227 = vld [vmem:[%s194 + $0x7c] sm:$0xf]
        %v228 = vld [vmem:[%s1] sm:$0xf]
        %v229 = vld [vmem:[%s1 + $0x4] sm:$0xf]
        %v230 = vld [vmem:[%s1 + $0x8] sm:$0xf]
        %v231 = vld [vmem:[%s1 + $0xc] sm:$0xf]
        %v232 = vld [vmem:[%s1 + $0x10] sm:$0x7]
        %v265 = vunpack.c.l.b16 %v196
        %v266 = vunpack.c.l.b16 %v197
        %v267 = vunpack.c.l.b16 %v198
        %v268 = vunpack.c.l.b16 %v199
        %v269 = vunpack.c.l.b16 %v200
        %v270 = vunpack.c.l.b16 %v201
        %v271 = vunpack.c.l.b16 %v202
        %v272 = vunpack.c.l.b16 %v203
        %v273 = vunpack.c.l.b16 %v204
        %v274 = vunpack.c.l.b16 %v205
        %v275 = vunpack.c.l.b16 %v206
        %v276 = vunpack.c.l.b16 %v207
        %v277 = vunpack.c.l.b16 %v208
        %v278 = vunpack.c.l.b16 %v209
        %v279 = vunpack.c.l.b16 %v210
        %v280 = vunpack.c.l.b16 %v211
        %v281 = vunpack.c.l.b16 %v212
        %v282 = vunpack.c.l.b16 %v213
        %v283 = vunpack.c.l.b16 %v214
        %v284 = vunpack.c.l.b16 %v215
        %v285 = vunpack.c.l.b16 %v216
        %v286 = vunpack.c.l.b16 %v217
        %v287 = vunpack.c.l.b16 %v218
        %v288 = vunpack.c.l.b16 %v219
        %v289 = vunpack.c.l.b16 %v220
        %v290 = vunpack.c.l.b16 %v221
        %v291 = vunpack.c.l.b16 %v222
        %v292 = vunpack.c.l.b16 %v223
        %v293 = vunpack.c.l.b16 %v224
        %v294 = vunpack.c.l.b16 %v225
        %v295 = vunpack.c.l.b16 %v226
        %v296 = vunpack.c.l.b16 %v227
        %v297 = vpack.c.b16 %v266, %v265
        %v298 = vpack.c.b16 %v268, %v267
        %v299 = vpack.c.b16 %v270, %v269
        %v300 = vpack.c.b16 %v272, %v271
        %v301 = vpack.c.b16 %v274, %v273
        %v302 = vpack.c.b16 %v276, %v275
        %v303 = vpack.c.b16 %v278, %v277
        %v304 = vpack.c.b16 %v280, %v279
        %v305 = vpack.c.b16 %v282, %v281
        %v306 = vpack.c.b16 %v284, %v283
        %v307 = vpack.c.b16 %v286, %v285
        %v308 = vpack.c.b16 %v288, %v287
        %v309 = vpack.c.b16 %v290, %v289
        %v310 = vpack.c.b16 %v292, %v291
        %v311 = vpack.c.b16 %v294, %v293
        %v312 = vpack.c.b16 %v296, %v295
        %v318 = vunpack.c.l.b16 %v228
        %v319 = vunpack.c.l.b16 %v229
        %v320 = vunpack.c.l.b16 %v230
        %v321 = vunpack.c.l.b16 %v231
        %v322 = vunpack.c.l.b16 %v232
        %v323 = vpack.c.b16 %v319, %v318
        %v324 = vpack.c.b16 %v321, %v320
        %v325 = vpack.c.b16 %v322, %v322
        %vm328 = vcmask 302080
        %v330 = vsel %vm328, %v297, 0
        %v333 = vsel %vm328, %v298, 0
        %v336 = vsel %vm328, %v299, 0
        %v339 = vsel %vm328, %v300, 0
        %v342 = vsel %vm328, %v301, 0
        %v345 = vsel %vm328, %v302, 0
        %v348 = vsel %vm328, %v303, 0
        %v351 = vsel %vm328, %v304, 0
        %v354 = vsel %vm328, %v305, 0
        %v357 = vsel %vm328, %v306, 0
        %v360 = vsel %vm328, %v307, 0
        %v363 = vsel %vm328, %v308, 0
        %v366 = vsel %vm328, %v309, 0
        %v369 = vsel %vm328, %v310, 0
        %v372 = vsel %vm328, %v311, 0
        %v375 = vsel %vm328, %v312, 0
        %vm377 = vcmask 1041408
        %vm378 = vcmask 1042432
        %v379 = vsel %vm377, 4294967295, 65535
        %v380 = vsel %vm378, %v379, 0
        %v382 = vand.u32 %v325, %v380
        %384 = vmatpush.bf16.msra.mxu0 0
        %385 = vmatpush.bf16.msra.mxu0 0
        %386 = vmatpush.bf16.msra.mxu0 0
        %387 = vmatpush.bf16.msra.mxu0 0
        %388 = vmatpush.bf16.msra.mxu0 0
        %389 = vmatpush.bf16.msra.mxu0 %v382
        %390 = vmatpush.bf16.msra.mxu0 %v324
        %391 = vmatpush.bf16.msra.mxu0 %v323
        %392 = vmatmul.bf16.gmra.mxu0 %v330
        %v393 = vpop.f32.mrf.mxu0
        %v394 = vadd.f32 0.0, %v393
        %v395 = vpop.f32.mrf.mxu0
        %v396 = vadd.f32 0.0, %v395
        %397 = vmatmul.bf16.gmra.mxu0 %v333
        %v398 = vpop.f32.mrf.mxu0
        %v399 = vadd.f32 0.0, %v398
        %v400 = vpop.f32.mrf.mxu0
        %v401 = vadd.f32 0.0, %v400
        %402 = vmatmul.bf16.gmra.mxu0 %v336
        %v403 = vpop.f32.mrf.mxu0
        %v404 = vadd.f32 0.0, %v403
        %v405 = vpop.f32.mrf.mxu0
        %v406 = vadd.f32 0.0, %v405
        %407 = vmatmul.bf16.gmra.mxu0 %v339
        %v408 = vpop.f32.mrf.mxu0
        %v409 = vadd.f32 0.0, %v408
        %v410 = vpop.f32.mrf.mxu0
        %v411 = vadd.f32 0.0, %v410
        %412 = vmatmul.bf16.gmra.mxu0 %v342
        %v413 = vpop.f32.mrf.mxu0
        %v414 = vadd.f32 0.0, %v413
        %v415 = vpop.f32.mrf.mxu0
        %v416 = vadd.f32 0.0, %v415
        %417 = vmatmul.bf16.gmra.mxu0 %v345
        %v418 = vpop.f32.mrf.mxu0
        %v419 = vadd.f32 0.0, %v418
        %v420 = vpop.f32.mrf.mxu0
        %v421 = vadd.f32 0.0, %v420
        %422 = vmatmul.bf16.gmra.mxu0 %v348
        %v423 = vpop.f32.mrf.mxu0
        %v424 = vadd.f32 0.0, %v423
        %v425 = vpop.f32.mrf.mxu0
        %v426 = vadd.f32 0.0, %v425
        %427 = vmatmul.bf16.gmra.mxu0 %v351
        %v428 = vpop.f32.mrf.mxu0
        %v429 = vadd.f32 0.0, %v428
        %v430 = vpop.f32.mrf.mxu0
        %v431 = vadd.f32 0.0, %v430
        %432 = vmatmul.bf16.gmra.mxu0 %v354
        %v433 = vpop.f32.mrf.mxu0
        %v434 = vadd.f32 0.0, %v433
        %v435 = vpop.f32.mrf.mxu0
        %v436 = vadd.f32 0.0, %v435
        %437 = vmatmul.bf16.gmra.mxu0 %v357
        %v438 = vpop.f32.mrf.mxu0
        %v439 = vadd.f32 0.0, %v438
        %v440 = vpop.f32.mrf.mxu0
        %v441 = vadd.f32 0.0, %v440
        %442 = vmatmul.bf16.gmra.mxu0 %v360
        %v443 = vpop.f32.mrf.mxu0
        %v444 = vadd.f32 0.0, %v443
        %v445 = vpop.f32.mrf.mxu0
        %v446 = vadd.f32 0.0, %v445
        %447 = vmatmul.bf16.gmra.mxu0 %v363
        %v448 = vpop.f32.mrf.mxu0
        %v449 = vadd.f32 0.0, %v448
        %v450 = vpop.f32.mrf.mxu0
        %v451 = vadd.f32 0.0, %v450
        %452 = vmatmul.bf16.gmra.mxu0 %v366
        %v453 = vpop.f32.mrf.mxu0
        %v454 = vadd.f32 0.0, %v453
        %v455 = vpop.f32.mrf.mxu0
        %v456 = vadd.f32 0.0, %v455
        %457 = vmatmul.bf16.gmra.mxu0 %v369
        %v458 = vpop.f32.mrf.mxu0
        %v459 = vadd.f32 0.0, %v458
        %v460 = vpop.f32.mrf.mxu0
        %v461 = vadd.f32 0.0, %v460
        %462 = vmatmul.bf16.gmra.mxu0 %v372
        %v463 = vpop.f32.mrf.mxu0
        %v464 = vadd.f32 0.0, %v463
        %v465 = vpop.f32.mrf.mxu0
        %v466 = vadd.f32 0.0, %v465
        %467 = vmatmul.bf16.gmra.mxu0 %v375
        %v468 = vpop.f32.mrf.mxu0
        %v469 = vadd.f32 0.0, %v468
        %v470 = vpop.f32.mrf.mxu0
        %v471 = vadd.f32 0.0, %v470
        %472 = vdwg.mxu0
        %v473 = vmax.f32 %v394, 0.0
        %v474 = vmax.f32 %v396, 0.0
        %v475 = vmax.f32 %v399, 0.0
        %v476 = vmax.f32 %v401, 0.0
        %v477 = vmax.f32 %v404, 0.0
        %v478 = vmax.f32 %v406, 0.0
        %v479 = vmax.f32 %v409, 0.0
        %v480 = vmax.f32 %v411, 0.0
        %v481 = vmax.f32 %v414, 0.0
        %v482 = vmax.f32 %v416, 0.0
        %v483 = vmax.f32 %v419, 0.0
        %v484 = vmax.f32 %v421, 0.0
        %v485 = vmax.f32 %v424, 0.0
        %v486 = vmax.f32 %v426, 0.0
        %v487 = vmax.f32 %v429, 0.0
        %v488 = vmax.f32 %v431, 0.0
        %v489 = vmax.f32 %v434, 0.0
        %v490 = vmax.f32 %v436, 0.0
        %v491 = vmax.f32 %v439, 0.0
        %v492 = vmax.f32 %v441, 0.0
        %v493 = vmax.f32 %v444, 0.0
        %v494 = vmax.f32 %v446, 0.0
        %v495 = vmax.f32 %v449, 0.0
        %v496 = vmax.f32 %v451, 0.0
        %v497 = vmax.f32 %v454, 0.0
        %v498 = vmax.f32 %v456, 0.0
        %v499 = vmax.f32 %v459, 0.0
        %v500 = vmax.f32 %v461, 0.0
        %v501 = vmax.f32 %v464, 0.0
        %v502 = vmax.f32 %v466, 0.0
        %v503 = vmax.f32 %v469, 0.0
        %v504 = vmax.f32 %v471, 0.0
        %v505 = vadd.f32 %v473, %v474
        %v506 = vadd.f32 %v505, %v475
        %v507 = vadd.f32 %v506, %v476
        %v508 = vadd.f32 %v507, %v477
        %v509 = vadd.f32 %v508, %v478
        %v510 = vadd.f32 %v509, %v479
        %v511 = vadd.f32 %v510, %v480
        %v512 = vadd.f32 %v511, %v481
        %v513 = vadd.f32 %v512, %v482
        %v514 = vadd.f32 %v513, %v483
        %v515 = vadd.f32 %v514, %v484
        %v516 = vadd.f32 %v515, %v485
        %v517 = vadd.f32 %v516, %v486
        %v518 = vadd.f32 %v517, %v487
        %v519 = vadd.f32 %v518, %v488
        %v520 = vadd.f32 %v519, %v489
        %v521 = vadd.f32 %v520, %v490
        %v522 = vadd.f32 %v521, %v491
        %v523 = vadd.f32 %v522, %v492
        %v524 = vadd.f32 %v523, %v493
        %v525 = vadd.f32 %v524, %v494
        %v526 = vadd.f32 %v525, %v495
        %v527 = vadd.f32 %v526, %v496
        %v528 = vadd.f32 %v527, %v497
        %v529 = vadd.f32 %v528, %v498
        %v530 = vadd.f32 %v529, %v499
        %v531 = vadd.f32 %v530, %v500
        %v532 = vadd.f32 %v531, %v501
        %v533 = vadd.f32 %v532, %v502
        %v534 = vadd.f32 %v533, %v503
        %v535 = vadd.f32 %v534, %v504
        %v536 = vrot.slane %v535, 4
        %v537 = vadd.f32 %v535, %v536
        %v538 = vrot.slane %v537, 2
        %v539 = vadd.f32 %v537, %v538
        %v540 = vrot.slane %v539, 1
        %v541 = vadd.f32 %v539, %v540
        %v542 = vpack.c.bf16 %v541, %v541
        %v543 = vld [vmem:[%s2] sm:$0xf]
        %v544 = vld [vmem:[%s2 + $0x4] sm:$0xf]
        %v545 = vld [vmem:[%s2 + $0x8] sm:$0xf]
        %v546 = vld [vmem:[%s2 + $0xc] sm:$0xf]
        %v547 = vld [vmem:[%s2 + $0x10] sm:$0xf]
        %v548 = vld [vmem:[%s2 + $0x14] sm:$0xf]
        %v549 = vld [vmem:[%s2 + $0x18] sm:$0xf]
        %v550 = vld [vmem:[%s2 + $0x1c] sm:$0xf]
        %v551 = vld [vmem:[%s2 + $0x20] sm:$0xf]
        %v552 = vld [vmem:[%s2 + $0x24] sm:$0xf]
        %v553 = vld [vmem:[%s2 + $0x28] sm:$0xf]
        %v554 = vld [vmem:[%s2 + $0x2c] sm:$0xf]
        %v555 = vld [vmem:[%s2 + $0x30] sm:$0xf]
        %v556 = vld [vmem:[%s2 + $0x34] sm:$0xf]
        %v557 = vld [vmem:[%s2 + $0x38] sm:$0xf]
        %v558 = vld [vmem:[%s2 + $0x3c] sm:$0xf]
        %v559 = vld [vmem:[%s3] sm:$0x1]
        %v576 = vunpack.c.l.b16 %v543
        %v577 = vunpack.c.l.b16 %v544
        %v578 = vunpack.c.l.b16 %v545
        %v579 = vunpack.c.l.b16 %v546
        %v580 = vunpack.c.l.b16 %v547
        %v581 = vunpack.c.l.b16 %v548
        %v582 = vunpack.c.l.b16 %v549
        %v583 = vunpack.c.l.b16 %v550
        %v584 = vunpack.c.l.b16 %v551
        %v585 = vunpack.c.l.b16 %v552
        %v586 = vunpack.c.l.b16 %v553
        %v587 = vunpack.c.l.b16 %v554
        %v588 = vunpack.c.l.b16 %v555
        %v589 = vunpack.c.l.b16 %v556
        %v590 = vunpack.c.l.b16 %v557
        %v591 = vunpack.c.l.b16 %v558
        %v592 = vpack.c.b16 %v577, %v576
        %v593 = vpack.c.b16 %v579, %v578
        %v594 = vpack.c.b16 %v581, %v580
        %v595 = vpack.c.b16 %v583, %v582
        %v596 = vpack.c.b16 %v585, %v584
        %v597 = vpack.c.b16 %v587, %v586
        %v598 = vpack.c.b16 %v589, %v588
        %v599 = vpack.c.b16 %v591, %v590
        %608 = vmatpush.bf16.msra.mxu0 %v599
        %609 = vmatpush.bf16.msra.mxu0 %v598
        %610 = vmatpush.bf16.msra.mxu0 %v597
        %611 = vmatpush.bf16.msra.mxu0 %v596
        %612 = vmatpush.bf16.msra.mxu0 %v595
        %613 = vmatpush.bf16.msra.mxu0 %v594
        %614 = vmatpush.bf16.msra.mxu0 %v593
        %615 = vmatpush.bf16.msra.mxu0 %v592
        %616 = vmatmul.bf16.gmra.mxu0 %v542
        %v617 = vpop.f32.mrf.mxu0
        %v618 = vadd.f32 %v559, %v617
        %v619 = vpop.f32.mrf.mxu0
        %620 = vdwg.mxu0
        %621 = vst [vmem:[%s189] sm:$0x1] %v618
        %s622 = sand.u32 %s115, 1
        %s623 = scalar_lea.sflag [#allocation3], %s622
        %s624 = sand.u32 %s115, 1
        %s625 = scalar_lea.vmem [#allocation2], %s624
        // Predicated region
        $region37: #{denn_forward.1} parent=35 // pred_check
          %p626 = pneg %p125
        $region38: #{denn_forward.1} parent=35 // pred_check_branch
          %628 = sbr.rel (%p626) target = $region40
        $region39: #{denn_forward.1} parent=35 // pred_region
          %630 = vsyncadd %s623, 0
          %s631 = scalar_lea.hbm %s4, %s18
          %s633 = sshll.u32 %s625, 4
          %s634 = int_to_ptr.vmem [resolvable:$true] %s633
          %s635 = sshll.u32 %s631, 4
          %s636 = int_to_ptr.hbm [resolvable:$true] %s635
          %638 = dma.vmem_to_hbm [thread:$0]  %s634, 16, %s636, %s623
        $region40: #{denn_forward.1} parent=35 // pred_fallthru
          _
      $region36: #{denn_forward.1} parent=5 // pred_fallthru
        _
      %p639 = scmp.le.s32.totalorder 2, %s13
      // Predicated region
      $region41: #{denn_forward.1} parent=5 // pred_check
        %p640 = pneg %p639
      $region42: #{denn_forward.1} parent=5 // pred_check_branch
        %642 = sbr.rel (%p640) target = $region44
      $region43: #{denn_forward.1} parent=5 // pred_region
        %s643 = ssub.s32 %s13, 2
        // Predicated region
        $region45: #{denn_forward.1} parent=43 // pred_check
          %p644 = pneg %p131
        $region46: #{denn_forward.1} parent=43 // pred_check_branch
          %646 = sbr.rel (%p644) target = $region48
        $region47: #{denn_forward.1} parent=43 // pred_region
          %s647 = sand.u32 %s116, 1
          %s648 = scalar_lea.sflag [#allocation3], %s647
          %s649 = sand.u32 %s116, 1
          %s650 = scalar_lea.vmem [#allocation2], %s649
          %652 = dma.done %s648, 16
        $region48: #{denn_forward.1} parent=43 // pred_fallthru
          _
      $region44: #{denn_forward.1} parent=5 // pred_fallthru
        _
    $region6: #{denn_forward.1} parent=1 // loop_footer
      %s17 = sadd.s32 1, %s13
    $region7: #{denn_forward.1} parent=1 // loop_footer_branch
      %12 = sbr.rel target = $region3
    $region8: #{denn_forward.1} parent=1 // loop_exit
      _
    %653 = vsyncpa [#allocation3], 1
    %s654 = scalar_lea.sflag [#allocation3], 1
    %655 = vsyncpa %s654, 1

</llo_original>
